<compile_context>
chip_gen: v6e
topology: v6e:2x2x1
jax: 0.10.0
libtpu: 0.0.40
codegen_flags: <defaults>
</compile_context>

<pallas_src>
import functools

import jax
import jax.numpy as jnp
from jax import lax
from jax.experimental import pallas as pl
from jax.experimental.pallas import tpu as pltpu

_LANES = 128
_ROW_ALIGN = 32                        # safe sublane multiple for f32/bf16/int8 blocks
_VMEM_WORKING_SET_BYTES = 16 * 1024 * 1024   # per-step working-set target (fits every generation)
_VMEM_LIMIT_BYTES = 32 * 1024 * 1024         # <= scoped/physical limit on v5e / v6e / v7x
_MAX_ROWS = 32768


def _round_up(x: int, m: int) -> int:
    return ((x + m - 1) // m) * m


def _auto_block_rows(bytes_per_row: int, total_rows: int, requested=None) -> int:
    """Pick the number of block rows: as big as the VMEM budget allows, aligned for tiling."""
    rows = requested if requested is not None else _VMEM_WORKING_SET_BYTES // max(bytes_per_row, 1)
    rows = min(rows, _MAX_ROWS)
    if rows >= total_rows:
        return total_rows                      # one full-extent block (always a legal block shape)
    rows = max(rows, _ROW_ALIGN)
    return (rows // _ROW_ALIGN) * _ROW_ALIGN   # multi-block grid -> keep rows sublane-aligned


# --------------------------------------------------------------------------------------
# Fast path: C == 2, logits viewed as a lane-dense interleaved (2N/128, 128) slab.
# --------------------------------------------------------------------------------------
def _binary_interleaved_kernel(flat_ref, label_ref, out_ref, *, n_rows, block_rows):
    i = pl.program_id(0)

    @pl.when(i == 0)
    def _():
        out_ref[...] = jnp.zeros_like(out_ref)

    x = flat_ref[...].astype(jnp.float32)        # (R, 128): [e0c0, e0c1, e1c0, e1c1, ...]
    lab = label_ref[...].astype(jnp.int32)       # (R, 128): label repeated across each class pair

    shape = x.shape
    lane = lax.broadcasted_iota(jnp.int32, shape, 1)
    rlane = pltpu.roll(lane, shift=_LANES - 1, axis=1)
    xs = pltpu.roll(x, shift=_LANES - 1, axis=1)   # roll-by-one partner of every lane

    # A lane is a "result lane" iff its roll partner is the other class of the SAME example;
    # this mask is correct regardless of the hardware roll direction convention.
    is_c0 = (lane & 1) == 0
    valid_pair = jnp.where(is_c0, rlane == lane + 1, rlane == lane - 1)

    # Per-example log-sum-exp over the 2 classes (symmetric in {x, xs}).
    m = jnp.maximum(x, xs)
    lse = m + jnp.log(jnp.exp(x - m) + jnp.exp(xs - m))

    # Target-class logit: own contribution + partner contribution (exactly one is nonzero).
    contrib = jnp.where(lab == (lane & 1), x, 0.0)
    picked = contrib + pltpu.roll(contrib, shift=_LANES - 1, axis=1)

    row = i * block_rows + lax.broadcasted_iota(jnp.int32, shape, 0)
    nll = jnp.where(valid_pair & (row < n_rows), lse - picked, 0.0)

    # Lane-wide resident accumulator; the cross-lane reduce happens once, in the wrapper.
    out_ref[...] += jnp.sum(nll, axis=0, keepdims=True)        # (1, 128)


def _nll_sum_binary(pred, label, block_rows):
    n = pred.shape[0]
    total_rows = (2 * n) // _LANES
    flat = pred.reshape(total_rows, _LANES)                     # free view, no HBM copy
    lab = jnp.repeat(label.astype(jnp.int8), 2).reshape(total_rows, _LANES)  # tiny int8 side array

    grid = pl.cdiv(total_rows, block_rows)
    kernel = functools.partial(_binary_interleaved_kernel,
                               n_rows=total_rows, block_rows=block_rows)
    out = pl.pallas_call(
        kernel,
        out_shape=jax.ShapeDtypeStruct((1, _LANES), jnp.float32),
        grid=(grid,),
        in_specs=[
            pl.BlockSpec((block_rows, _LANES), lambda i: (i, 0)),
            pl.BlockSpec((block_rows, _LANES), lambda i: (i, 0)),
        ],
        out_specs=pl.BlockSpec((1, _LANES), lambda i: (0, 0)),
        compiler_params=pltpu.CompilerParams(
            dimension_semantics=("arbitrary",),
            vmem_limit_bytes=_VMEM_LIMIT_BYTES),
    )(flat, lab)
    return jnp.sum(out)


# --------------------------------------------------------------------------------------
# General path: any C, logits consumed in native (N, C) orientation, row-blocked.
# --------------------------------------------------------------------------------------
def _rowwise_ce_kernel(pred_ref, label_ref, out_ref, *, n_rows, block_rows):
    i = pl.program_id(0)

    @pl.when(i == 0)
    def _():
        out_ref[...] = jnp.zeros_like(out_ref)

    logits = pred_ref[...].astype(jnp.float32)       # (block_rows, C), f32 compute
    labels = label_ref[...].astype(jnp.int32)        # (block_rows, 1)

    m = jnp.max(logits, axis=1, keepdims=True)
    lse = m + jnp.log(jnp.sum(jnp.exp(logits - m), axis=1, keepdims=True))
    cls = lax.broadcasted_iota(jnp.int32, logits.shape, 1)
    picked = jnp.sum(jnp.where(cls == labels, logits, 0.0), axis=1, keepdims=True)

    row = i * block_rows + lax.broadcasted_iota(jnp.int32, (block_rows, 1), 0)
    out_ref[...] += jnp.where(row < n_rows, lse - picked, 0.0)   # (block_rows, 1) resident acc


def _nll_sum_rowwise(pred, labels_col, block_rows):
    n, c = pred.shape
    grid = pl.cdiv(n, block_rows)
    kernel = functools.partial(_rowwise_ce_kernel, n_rows=n, block_rows=block_rows)
    out = pl.pallas_call(
        kernel,
        out_shape=jax.ShapeDtypeStruct((block_rows, 1), jnp.float32),
        grid=(grid,),
        in_specs=[
            pl.BlockSpec((block_rows, c), lambda i: (i, 0)),
            pl.BlockSpec((block_rows, 1), lambda i: (i, 0)),
        ],
        out_specs=pl.BlockSpec((block_rows, 1), lambda i: (0, 0)),
        compiler_params=pltpu.CompilerParams(
            dimension_semantics=("arbitrary",),
            vmem_limit_bytes=_VMEM_LIMIT_BYTES),
    )(pred, labels_col)
    return jnp.sum(out)


# --------------------------------------------------------------------------------------
# Wrapper (DomainLoss.forward equivalent).
# --------------------------------------------------------------------------------------
def domain_loss(batch_group_pred: jax.Array,
                batch_group_label: jax.Array,
                domain_loss_weight,
                *, block_rows=None) -> jax.Array:
    """loss = domain_loss_weight * mean_i[ logsumexp(pred_i) - pred_i[label_i] ]."""
    n, c = batch_group_pred.shape
    in_bytes = batch_group_pred.dtype.itemsize

    if c == 2 and (2 * n) % _LANES == 0:
        # Binary fast path: interleaved lane-dense flat view, int8 labels.
        total_rows = (2 * n) // _LANES
        bytes_per_row = _LANES * (2 * in_bytes + 6 * 4) + 2 * _LANES   # dbl-buf in + f32 temps + labels
        br = _auto_block_rows(bytes_per_row, total_rows, block_rows)
        total = _nll_sum_binary(batch_group_pred, batch_group_label, br)
    else:
        # General path: native (N, C) row blocks.  (int32 labels kept here: narrow (rows,1)
        # int8 blocks hit sublane-packing corner cases; label bytes only matter for tiny C,
        # which the fast path above covers.)
        cpad = _round_up(c, _LANES)
        bytes_per_row = cpad * (2 * in_bytes + 4 * 4) + 2 * _LANES * 4 + 8
        br = _auto_block_rows(bytes_per_row, n, block_rows)
        labels_col = batch_group_label.astype(jnp.int32).reshape(n, 1)
        total = _nll_sum_rowwise(batch_group_pred, labels_col, br)

    # Mean over the true N and the loss weight (no float(): works for traced weights too).
    return domain_loss_weight * (total / n)


def _reference(pred, label, weight):
    pred32 = pred.astype(jnp.float32)
    lse = jax.scipy.special.logsumexp(pred32, axis=-1)
    picked = jnp.take_along_axis(pred32, label[:, None].astype(jnp.int32), axis=-1)[:, 0]
    return weight * jnp.mean(lse - picked)


if __name__ == "__main__":
    key = jax.random.PRNGKey(0)
    k1, k2, k3, k4, k5, k6, k7, k8 = jax.random.split(key, 8)

    # 1) Small binary case (general path: 2*8 not a multiple of 128).
    N, C = 8, 2
    pred = jax.random.normal(k1, (N, C), dtype=jnp.float32)
    label = jax.random.randint(k2, (N,), 0, C, dtype=jnp.int32)
    loss = domain_loss(pred, label, 0.5)
    jax.block_until_ready(loss)
    assert jnp.allclose(loss, _reference(pred, label, 0.5), atol=1e-4, rtol=1e-4), "case1"

    # 2) Binary fast path, single block (N multiple of 64), bf16 logits.
    N2, C2 = 256, 2
    pred2 = jax.random.normal(k3, (N2, C2), dtype=jnp.bfloat16)
    label2 = jax.random.randint(k4, (N2,), 0, C2, dtype=jnp.int32)
    loss2 = domain_loss(pred2, label2, 0.25)
    jax.block_until_ready(loss2)
    assert jnp.allclose(loss2, _reference(pred2, label2, 0.25), atol=1e-4, rtol=1e-4), "case2"

    # 3) Binary fast path, multi-step grid with a ragged last block.
    N3, C3 = 2560, 2          # 2*N3/128 = 40 rows; block_rows=32 -> 2 steps, ragged tail
    pred3 = jax.random.normal(k5, (N3, C3), dtype=jnp.bfloat16)
    label3 = jax.random.randint(k6, (N3,), 0, C3, dtype=jnp.int32)
    loss3 = domain_loss(pred3, label3, 1.0, block_rows=32)
    jax.block_until_ready(loss3)
    assert jnp.allclose(loss3, _reference(pred3, label3, 1.0), atol=1e-4, rtol=1e-4), "case3"

    # 4) General path, multi-class, multi-step grid with a ragged last block.
    N4, C4 = 600, 5
    pred4 = jax.random.normal(k7, (N4, C4), dtype=jnp.float32)
    label4 = jax.random.randint(k8, (N4,), 0, C4, dtype=jnp.int32)
    loss4 = domain_loss(pred4, label4, 0.3, block_rows=128)
    jax.block_until_ready(loss4)
    assert jnp.allclose(loss4, _reference(pred4, label4, 0.3), atol=1e-4, rtol=1e-4), "case4"

    print("KERNEL_OK")
</pallas_src>

<mosaic_0001>
module attributes {stable_mosaic.version = 11 : i64} {
  func.func @_rowwise_ce_kernel(%arg0: i32, %arg1: memref<8x2xf32, #tpu.memory_space<vmem>>, %arg2: memref<8x1xi32, #tpu.memory_space<vmem>>, %arg3: memref<8x1xf32, #tpu.memory_space<vmem>>) attributes {dimension_semantics = [#tpu.dimension_semantics<arbitrary>], iteration_bounds = array<i64: 1>, scalar_prefetch = 0 : i64, scratch_operands = 0 : i64, tpu.core_type = #tpu.core_type<tc>, window_params = [{transform_indices = @transform_0, window_bounds = array<i64: 8, 2>}, {transform_indices = @transform_1, window_bounds = array<i64: 8, 1>}, {pipeline_mode = #tpu.pipeline_mode<synchronous>, transform_indices = @transform_2, window_bounds = array<i64: 8, 1>}]} {
    %c0_i32 = arith.constant 0 : i32
    %0 = arith.cmpi eq, %arg0, %c0_i32 : i32
    %1 = arith.extui %0 : i1 to i32
    %c0_i32_0 = arith.constant 0 : i32
    %2 = arith.cmpi ne, %1, %c0_i32_0 : i32
    scf.if %2 {
      %cst_13 = arith.constant 0.000000e+00 : f32
      %33 = vector.broadcast %cst_13 : f32 to vector<8x1xf32>
      %c0_14 = arith.constant 0 : index
      %c0_15 = arith.constant 0 : index
      %34 = vector.load %arg3[%c0_14, %c0_15] : memref<8x1xf32, #tpu.memory_space<vmem>>, vector<8x1xf32>
      tpu.vector_store %arg3[%c0_14, %c0_15], %33 {strides = array<i32>} : memref<8x1xf32, #tpu.memory_space<vmem>>, vector<8x1xf32>,
    } else {
    }
    %c0 = arith.constant 0 : index
    %c0_1 = arith.constant 0 : index
    %3 = vector.load %arg1[%c0, %c0_1] : memref<8x2xf32, #tpu.memory_space<vmem>>, vector<8x2xf32>
    %c0_2 = arith.constant 0 : index
    %c0_3 = arith.constant 0 : index
    %4 = vector.load %arg2[%c0_2, %c0_3] : memref<8x1xi32, #tpu.memory_space<vmem>>, vector<8x1xi32>
    %cst = arith.constant dense<0xFF800000> : vector<8xf32>
    %5 = vector.multi_reduction <maximumf>, %3, %cst [1] : vector<8x2xf32> to vector<8xf32>
    %6 = vector.shape_cast %5 : vector<8xf32> to vector<8x1xf32>
    %7 = vector.broadcast %6 : vector<8x1xf32> to vector<8x2xf32>
    %8 = arith.subf %3, %7 : vector<8x2xf32>
    %9 = math.exp %8 : vector<8x2xf32>
    %cst_4 = arith.constant dense<0.000000e+00> : vector<8xf32>
    %10 = vector.multi_reduction <add>, %9, %cst_4 [1] : vector<8x2xf32> to vector<8xf32>
    %11 = vector.shape_cast %10 : vector<8xf32> to vector<8x1xf32>
    %12 = math.log %11 : vector<8x1xf32>
    %13 = arith.addf %6, %12 : vector<8x1xf32>
    %14 = tpu.iota {dimensions = array<i32: 1>} : vector<8x2xi32>
    %15 = vector.broadcast %4 : vector<8x1xi32> to vector<8x2xi32>
    %16 = arith.cmpi eq, %14, %15 : vector<8x2xi32>
    %cst_5 = arith.constant 0.000000e+00 : f32
    %17 = vector.broadcast %cst_5 : f32 to vector<8x2xf32>
    %18 = arith.select %16, %3, %17 : vector<8x2xi1>, vector<8x2xf32>
    %cst_6 = arith.constant dense<0.000000e+00> : vector<8xf32>
    %19 = vector.multi_reduction <add>, %18, %cst_6 [1] : vector<8x2xf32> to vector<8xf32>
    %20 = vector.shape_cast %19 : vector<8xf32> to vector<8x1xf32>
    %c8_i32 = arith.constant 8 : i32
    %21 = arith.muli %arg0, %c8_i32 : i32
    %22 = tpu.iota {dimensions = array<i32: 0>} : vector<8x1xi32>
    %23 = vector.broadcast %21 : i32 to vector<8x1xi32>
    %24 = arith.addi %23, %22 : vector<8x1xi32>
    %c0_7 = arith.constant 0 : index
    %c0_8 = arith.constant 0 : index
    %25 = vector.load %arg3[%c0_7, %c0_8] : memref<8x1xf32, #tpu.memory_space<vmem>>, vector<8x1xf32>
    %c8_i32_9 = arith.constant 8 : i32
    %26 = vector.broadcast %c8_i32_9 : i32 to vector<8x1xi32>
    %27 = arith.cmpi slt, %24, %26 : vector<8x1xi32>
    %28 = arith.subf %13, %20 : vector<8x1xf32>
    %cst_10 = arith.constant 0.000000e+00 : f32
    %29 = vector.broadcast %cst_10 : f32 to vector<8x1xf32>
    %30 = arith.select %27, %28, %29 : vector<8x1xi1>, vector<8x1xf32>
    %31 = arith.addf %25, %30 : vector<8x1xf32>
    %c0_11 = arith.constant 0 : index
    %c0_12 = arith.constant 0 : index
    %32 = vector.load %arg3[%c0_11, %c0_12] : memref<8x1xf32, #tpu.memory_space<vmem>>, vector<8x1xf32>
    tpu.vector_store %arg3[%c0_11, %c0_12], %31 {strides = array<i32>} : memref<8x1xf32, #tpu.memory_space<vmem>>, vector<8x1xf32>,
    return
  }
  func.func @transform_0(%arg0: i32) -> (i32, i32) {
    %c0_i32 = arith.constant 0 : i32
    %c0_i32_0 = arith.constant 0 : i32
    return %arg0, %c0_i32 : i32, i32
  }
  func.func @transform_1(%arg0: i32) -> (i32, i32) {
    %c0_i32 = arith.constant 0 : i32
    %c0_i32_0 = arith.constant 0 : i32
    return %arg0, %c0_i32 : i32, i32
  }
  func.func @transform_2(%arg0: i32) -> (i32, i32) {
    %c0_i32 = arith.constant 0 : i32
    %c0_i32_0 = arith.constant 0 : i32
    %c0_i32_1 = arith.constant 0 : i32
    return %c0_i32, %c0_i32_0 : i32, i32
  }
}

</mosaic_0001>

<llo_original>
// kernel: tpu_custom_call.1
$region0: #{tpu_custom_call.1}
  #allocation0 [shape = 'u32[]', space=smem, size = 0x4, offset = 0x4, fixed_abs, tag = 'smem constant byte address 0x4 - core index']
  #allocation1 [shape = 'u32[144,128]{1,0:T(1,128)}', space=vmem, size = 0x12000, scoped, tag = 'internal scratch']
  %s0 = inlined_call_operand.vmem [shape: f32[8,2], index: 0, kind: input, shape index: {}]
  %s1 = inlined_call_operand.vmem [shape: s32[8,1], index: 1, kind: input, shape index: {}]
  %s2 = inlined_call_operand.vmem [shape: f32[8,1], index: 2, kind: output, shape index: {}]
  %s3 = sld [smem:[#allocation0]]
  $region22: #{tpu_custom_call.1} parent=0
    _
  %s5 = ssub.s32 1, %s3
  %s6 = scalar_select 0, %s5, %s3
  // Predicated region
  $region2: #{tpu_custom_call.1} parent=0 // pred_check
    _
  $region3: #{tpu_custom_call.1} parent=0 // pred_check_branch
    %8 = sbr.rel (0) target = $region5
  $region4: #{tpu_custom_call.1} parent=0 // pred_region
    _
  $region5: #{tpu_custom_call.1} parent=0 // pred_fallthru
    _
  // Predicated region
  $region6: #{tpu_custom_call.1} parent=0 // pred_check
    _
  $region7: #{tpu_custom_call.1} parent=0 // pred_check_branch
    %10 = sbr.rel (0) target = $region9
  $region8: #{tpu_custom_call.1} parent=0 // pred_region
    _
  $region9: #{tpu_custom_call.1} parent=0 // pred_fallthru
    _
  %p11 = scmp.eq.s32.totalorder 0, 0
  // Predicated region
  $region10: #{tpu_custom_call.1} parent=0 // pred_check
    %p12 = pneg %p11
  $region11: #{tpu_custom_call.1} parent=0 // pred_check_branch
    %14 = sbr.rel (%p12) target = $region13
  $region12: #{tpu_custom_call.1} parent=0 // pred_region
    %vm15 = vcmask 7168
    %16 = vst.msk [vmem:[%s2] sm:$0xff] %vm15, 0.0
  $region13: #{tpu_custom_call.1} parent=0 // pred_fallthru
    _
  %v17 = vld [vmem:[%s0] sm:$0xff]
  %v18 = vld [vmem:[%s1] sm:$0xff]
  %vm19 = vcmask 15360
  %v20 = vsel %vm19, %v17, -inf
  %21 = vmax.xlane.f32.xlu0 %v20
  %v22 = vpop.xlane.xlu0 %21
  %v23 = vsub.f32 %v17, %v22
  %v24 = vmul.f32 %v23, 1.442695
  %v25 = vpow.pop %v24
  %v26 = vsel %vm19, %v25, 0.0
  %27 = vadd.xlane.f32.xlu0 %v26
  %v28 = vpop.xlane.xlu0 %27
  %v29 = vlog2.pop %v28
  %v30 = vmul.f32 %v29, 0.6931472
  %v31 = vadd.f32 %v22, %v30
  %v32 = vlaneseq
  %v33 = vand.u32 %v32, 127
  %34 = vset.pattern.permute.xlu0 0
  %35 = vperm.xlu0 %34, %v18
  %v36 = vpop.permute.xlu0 %35
  %vm37 = vcmp.eq.s32.totalorder %v33, %v36
  %v38 = vsel %vm37, %v17, 0.0
  %v39 = vsel %vm19, %v38, 0.0
  %40 = vadd.xlane.f32.xlu0 %v39
  %v41 = vpop.xlane.xlu0 %40
  %s42 = smul.u32 0, 8
  %v43 = vlaneseq
  %v44 = vshrl.u32 %v43, 7
  %v45 = vstv %s42
  %v46 = vadd.s32 %v45, %v44
  %v47 = vld [vmem:[%s2] sm:$0xff]
  %vm48 = vcmp.lt.s32.totalorder %v46, 8
  %v49 = vsub.f32 %v31, %v41
  %v50 = vsel %vm48, %v49, 0.0
  %v51 = vadd.f32 %v47, %v50
  %vm52 = vcmask 7168
  %53 = vst.msk [vmem:[%s2] sm:$0xff] %vm52, %v51
  // Predicated region
  $region14: #{tpu_custom_call.1} parent=0 // pred_check
    _
  $region15: #{tpu_custom_call.1} parent=0 // pred_check_branch
    %55 = sbr.rel (0) target = $region17
  $region16: #{tpu_custom_call.1} parent=0 // pred_region
    _
  $region17: #{tpu_custom_call.1} parent=0 // pred_fallthru
    _
  // Predicated region
  $region18: #{tpu_custom_call.1} parent=0 // pred_check
    _
  $region19: #{tpu_custom_call.1} parent=0 // pred_check_branch
    %57 = sbr.rel (0) target = $region21
  $region20: #{tpu_custom_call.1} parent=0 // pred_region
    _
  $region21: #{tpu_custom_call.1} parent=0 // pred_fallthru
    _

</llo_original>
